<compile_context>
chip_gen: v6e
topology: v6e:2x2x1
jax: 0.10.0
libtpu: 0.0.40
codegen_flags: <defaults>
</compile_context>

<pallas_src>
import functools
from typing import NamedTuple, Optional

import jax
import jax.numpy as jnp
from jax.experimental import pallas as pl
from jax.experimental.pallas import tpu as pltpu


def _round_up(n: int, m: int) -> int:
    return ((n + m - 1) // m) * m


def _cdiv(a: int, b: int) -> int:
    return -(-a // b)


_HW_PLAN_CACHE = None


def _hw_plan():
    """Generation-aware VMEM budgets (v5e/v6e: 128 MiB/TC, v7x: 64 MiB/TC, 2 TCs)."""
    global _HW_PLAN_CACHE
    if _HW_PLAN_CACHE is not None:
        return _HW_PLAN_CACHE
    vmem_cap = 128 << 20
    try:
        info = pltpu.get_tpu_info()
        vmem_cap = int(getattr(info, "vmem_capacity_bytes", vmem_cap))
    except Exception:
        pass
    small_vmem = vmem_cap <= (80 << 20)  # v7x-like (64 MiB per TensorCore)
    vmem_limit = min((48 << 20) if small_vmem else (96 << 20), (vmem_cap * 3) // 4)
    _HW_PLAN_CACHE = dict(
        vmem_limit=vmem_limit,
        weight_budget=(12 << 20) if small_vmem else (40 << 20),
        default_tile_m=256 if small_vmem else 512,
        multi_tc=small_vmem,  # v7x has 2 TensorCores per chip; split the row axis
    )
    return _HW_PLAN_CACHE


class PreparedAdapterWeights(NamedTuple):
    w1t: jax.Array  # (in_p, mid_pp) == fc1.weight.T, zero-padded, matmul dtype
    w2t: jax.Array  # (mid_pp, in_p) == fc2.weight.T, zero-padded, matmul dtype
    in_dim: int
    mid_dim: int
    in_p: int
    mid_pp: int
    tile_k: int


def prepare_adapter_weights(
    w1,                              # (mid_dim, in_dim) == fc1.weight
    w2,                              # (in_dim, mid_dim) == fc2.weight
    *,
    matmul_dtype=jnp.bfloat16,       # None -> keep weight dtype (exact f32 path)
    weight_chunk_budget_bytes: Optional[int] = None,
) -> PreparedAdapterWeights:
    """One-time weight transform (transpose + lane pad + cast).  Cache the result
    outside the training/decode step so no weight-sized copies run per call."""
    mid_dim, in_dim = w1.shape
    assert w2.shape == (in_dim, mid_dim)
    w_dtype = jnp.dtype(matmul_dtype) if matmul_dtype is not None else jnp.dtype(w1.dtype)

    in_p = _round_up(in_dim, 128)
    if weight_chunk_budget_bytes is None:
        weight_chunk_budget_bytes = _hw_plan()["weight_budget"]

    # Chunk the mid dim so the per-step weight working set (2 weights x 2 pipeline
    # buffers, sized with the *weight* itemsize) stays inside the budget.  Floor of
    # 256 so a tight budget never half-fills the 256-wide MXU on v6e/v7x.
    per_col_bytes = 2 * in_p * w_dtype.itemsize * 2
    max_tk = max(256, (weight_chunk_budget_bytes // per_col_bytes) // 128 * 128)
    tile_k = min(_round_up(mid_dim, 128), max_tk)
    mid_pp = _round_up(mid_dim, tile_k)

    # Zero padding is exact: bias-free Linears and GELU(0) == 0.
    w1t = jnp.zeros((in_p, mid_pp), w_dtype).at[:in_dim, :mid_dim].set(
        w1.T.astype(w_dtype))
    w2t = jnp.zeros((mid_pp, in_p), w_dtype).at[:mid_dim, :in_dim].set(
        w2.T.astype(w_dtype))
    return PreparedAdapterWeights(w1t, w2t, in_dim, mid_dim, in_p, mid_pp, tile_k)


def _adapter_kernel(x_ref, w1t_ref, w2t_ref, o_ref, acc_ref, *, approximate_gelu):
    """One (row-tile, mid-chunk) grid step of: out = x + GELU(x @ W1^T) @ W2^T."""
    k = pl.program_id(1)

    # Residual in full precision on the first mid-dim chunk.
    @pl.when(k == 0)
    def _():
        acc_ref[...] = x_ref[...].astype(jnp.float32)

    # bf16 MXU operands (no-op cast for the exact-f32 path), f32 accumulation.
    xb = x_ref[...].astype(w1t_ref.dtype)
    h = jnp.dot(xb, w1t_ref[...], preferred_element_type=jnp.float32)
    # tanh GELU -> EUP slot (free under MXU work); erf GELU matches torch defaults.
    h = jax.nn.gelu(h, approximate=approximate_gelu)
    acc_ref[...] += jnp.dot(
        h.astype(w2t_ref.dtype), w2t_ref[...], preferred_element_type=jnp.float32)

    # Single lane-dense store of the finished tile after the last chunk.
    @pl.when(k == pl.num_programs(1) - 1)
    def _():
        o_ref[...] = acc_ref[...].astype(o_ref.dtype)


def adapter_forward(
    x,
    w1=None,
    w2=None,
    *,
    prepared: Optional[PreparedAdapterWeights] = None,
    matmul_dtype=jnp.bfloat16,
    approximate_gelu: bool = True,
    tile_m: Optional[int] = None,
    vmem_limit_bytes: Optional[int] = None,
    weight_chunk_budget_bytes: Optional[int] = None,
):
    """x: (..., in_dim). Returns x + GELU(x @ w1.T) @ w2.T with x's shape/dtype."""
    if prepared is None:
        assert w1 is not None and w2 is not None
        prepared = prepare_adapter_weights(
            w1, w2, matmul_dtype=matmul_dtype,
            weight_chunk_budget_bytes=weight_chunk_budget_bytes)

    hw = _hw_plan()
    if vmem_limit_bytes is None:
        vmem_limit_bytes = hw["vmem_limit"]
    if tile_m is None:
        tile_m = hw["default_tile_m"]

    orig_shape = x.shape
    in_dim, in_p = prepared.in_dim, prepared.in_p
    assert orig_shape[-1] == in_dim
    x2 = x.reshape(-1, in_dim)
    rows = x2.shape[0]
    out_dtype = x2.dtype
    x_itemsize = jnp.dtype(out_dtype).itemsize

    # Activations: no wrapper-side copy when in_dim is already lane-dense; otherwise
    # pad only the lane dim (padding lanes must be exact zeros - they are contracted).
    if in_p == in_dim:
        xp = x2
    else:
        xp = jnp.zeros((rows, in_p), out_dtype).at[:, :in_dim].set(x2)

    # Row tiling: big M tile, rows NOT padded - the last tile may overshoot (each
    # output row depends only on its own input row; overshoot rows are never written).
    granule = max(8, 32 // x_itemsize)  # 8 for f32, 16 for bf16
    tile_m = _round_up(min(tile_m, _round_up(rows, granule)), granule)
    if hw["multi_tc"] and rows >= 2 * granule:
        # Ensure >= 2 row tiles so the "parallel" axis splits across both TensorCores.
        tile_m = min(tile_m, _round_up(_cdiv(rows, 2), granule))

    tile_k = prepared.tile_k
    w_itemsize = jnp.dtype(prepared.w1t.dtype).itemsize

    # Keep the per-step VMEM footprint inside the generation's budget.
    def _footprint(tm):
        io_bytes = tm * in_p * x_itemsize * 4          # x + out, 2 buffers each
        acc_bytes = tm * in_p * 4                      # f32 accumulator
        w_bytes = 2 * in_p * tile_k * w_itemsize * 2   # 2 weights, 2 buffers
        return io_bytes + acc_bytes + w_bytes

    while tile_m > granule and _footprint(tile_m) > (vmem_limit_bytes * 9) // 10:
        tile_m = max(granule, _round_up(tile_m // 2, granule))

    num_row_tiles = _cdiv(rows, tile_m)
    num_k = prepared.mid_pp // tile_k
    grid = (num_row_tiles, num_k)

    kernel = functools.partial(_adapter_kernel, approximate_gelu=bool(approximate_gelu))

    def _run(weight_pipeline_mode):
        w_kwargs = ({} if weight_pipeline_mode is None
                    else {"pipeline_mode": weight_pipeline_mode})
        return pl.pallas_call(
            kernel,
            out_shape=jax.ShapeDtypeStruct((rows, in_p), out_dtype),
            grid_spec=pltpu.PrefetchScalarGridSpec(
                num_scalar_prefetch=0,
                grid=grid,
                in_specs=[
                    pl.BlockSpec((tile_m, in_p), lambda i, k: (i, 0)),
                    # Constant along the row axis -> fetched only when k changes;
                    # with num_k == 1 the weights are DMA'd exactly once (resident).
                    pl.BlockSpec((in_p, tile_k), lambda i, k: (0, k), **w_kwargs),
                    pl.BlockSpec((tile_k, in_p), lambda i, k: (k, 0), **w_kwargs),
                ],
                out_specs=pl.BlockSpec((tile_m, in_p), lambda i, k: (i, 0)),
                scratch_shapes=[pltpu.VMEM((tile_m, in_p), jnp.float32)],
            ),
            compiler_params=pltpu.CompilerParams(
                dimension_semantics=("parallel", "arbitrary"),
                vmem_limit_bytes=vmem_limit_bytes,
            ),
        )(xp, prepared.w1t, prepared.w2t)

    if num_k == 1:
        # Constant-index weight blocks: the second pipeline buffer is pure waste.
        try:
            out = _run(pl.Buffered(1))
        except Exception:
            out = _run(None)  # fall back if single buffering is not supported
    else:
        out = _run(None)

    if in_p != in_dim:
        out = out[:, :in_dim]
    return out.reshape(orig_shape)


if __name__ == "__main__":
    # Small shapes consistent with the module: batch=2, seq=8, in_dim=32, mid_dim=16
    batch, seq, in_dim, mid_dim = 2, 8, 32, 16

    key = jax.random.PRNGKey(0)
    kx, k1, k2 = jax.random.split(key, 3)
    x = jax.random.normal(kx, (batch, seq, in_dim), dtype=jnp.float32)
    # Deterministic synthetic parameters (same shapes nn.Linear would create)
    w1 = jax.random.normal(k1, (mid_dim, in_dim), dtype=jnp.float32) * 0.05
    w2 = jax.random.normal(k2, (in_dim, mid_dim), dtype=jnp.float32) * 0.05

    # Module-exact reference (f32 matmuls, erf GELU == torch.nn.GELU() default).
    ref = x + jax.nn.gelu(x @ w1.T, approximate=False) @ w2.T

    # Fast path: bf16 MXU operands (f32 accumulation), tanh GELU, cached weights.
    prepared = prepare_adapter_weights(w1, w2, matmul_dtype=jnp.bfloat16)
    out = adapter_forward(x, prepared=prepared)
    out = jax.block_until_ready(out)
    assert out.shape == x.shape and out.dtype == x.dtype
    assert jnp.allclose(out, ref, atol=1e-2, rtol=1e-2), "fast path mismatch"

    # Exact path: f32 matmuls + erf GELU, bit-faithful to the PyTorch module numerics.
    out_exact = adapter_forward(x, w1, w2, matmul_dtype=None, approximate_gelu=False)
    out_exact = jax.block_until_ready(out_exact)
    assert jnp.allclose(out_exact, ref, atol=1e-5, rtol=1e-5), "exact path mismatch"

    print("KERNEL_OK")
</pallas_src>

<mosaic_0001>
module attributes {stable_mosaic.version = 11 : i64} {
  func.func @_adapter_kernel(%arg0: i32, %arg1: i32, %arg2: memref<16x128xf32, #tpu.memory_space<vmem>>, %arg3: memref<128x128xbf16, #tpu.memory_space<vmem>>, %arg4: memref<128x128xbf16, #tpu.memory_space<vmem>>, %arg5: memref<16x128xf32, #tpu.memory_space<vmem>>, %arg6: memref<16x128xf32, #tpu.memory_space<vmem>>) attributes {dimension_semantics = [#tpu.dimension_semantics<parallel>, #tpu.dimension_semantics<arbitrary>], iteration_bounds = array<i64: 1, 1>, scalar_prefetch = 0 : i64, scratch_operands = 1 : i64, tpu.core_type = #tpu.core_type<tc>, window_params = [{transform_indices = @transform_0, window_bounds = array<i64: 16, 128>}, {pipeline_mode = #tpu.pipeline_mode<synchronous>, transform_indices = @transform_1, window_bounds = array<i64: 128, 128>}, {pipeline_mode = #tpu.pipeline_mode<synchronous>, transform_indices = @transform_2, window_bounds = array<i64: 128, 128>}, {transform_indices = @transform_3, window_bounds = array<i64: 16, 128>}]} {
    %c0_i32 = arith.constant 0 : i32
    %0 = arith.cmpi eq, %arg1, %c0_i32 : i32
    %1 = arith.extui %0 : i1 to i32
    %c0_i32_0 = arith.constant 0 : i32
    %2 = arith.cmpi ne, %1, %c0_i32_0 : i32
    scf.if %2 {
      %c0_17 = arith.constant 0 : index
      %c0_18 = arith.constant 0 : index
      %29 = vector.load %arg2[%c0_17, %c0_18] : memref<16x128xf32, #tpu.memory_space<vmem>>, vector<16x128xf32>
      %c0_19 = arith.constant 0 : index
      %c0_20 = arith.constant 0 : index
      %30 = vector.load %arg6[%c0_19, %c0_20] : memref<16x128xf32, #tpu.memory_space<vmem>>, vector<16x128xf32>
      tpu.vector_store %arg6[%c0_19, %c0_20], %29 {strides = array<i32>} : memref<16x128xf32, #tpu.memory_space<vmem>>, vector<16x128xf32>,
    } else {
    }
    %c0 = arith.constant 0 : index
    %c0_1 = arith.constant 0 : index
    %3 = vector.load %arg2[%c0, %c0_1] : memref<16x128xf32, #tpu.memory_space<vmem>>, vector<16x128xf32>
    %4 = arith.truncf %3 : vector<16x128xf32> to vector<16x128xbf16>
    %c0_2 = arith.constant 0 : index
    %c0_3 = arith.constant 0 : index
    %5 = vector.load %arg3[%c0_2, %c0_3] : memref<128x128xbf16, #tpu.memory_space<vmem>>, vector<128x128xbf16>
    %cst = arith.constant dense<0.000000e+00> : vector<16x128xf32>
    %6 = tpu.matmul %4, %5, %cst {dimension_numbers = #tpu.dot_dimension_numbers<[1], [0], [0], [1], [0, 0, 1, 1], [], []>} : vector<16x128xbf16>, vector<128x128xbf16>, vector<16x128xf32> -> vector<16x128xf32>
    %7 = arith.mulf %6, %6 : vector<16x128xf32>
    %8 = arith.mulf %6, %7 : vector<16x128xf32>
    %cst_4 = arith.constant 4.471500e-02 : f32
    %9 = vector.broadcast %cst_4 : f32 to vector<16x128xf32>
    %10 = arith.mulf %9, %8 : vector<16x128xf32>
    %11 = arith.addf %6, %10 : vector<16x128xf32>
    %cst_5 = arith.constant 0.797884583 : f32
    %12 = vector.broadcast %cst_5 : f32 to vector<16x128xf32>
    %13 = arith.mulf %12, %11 : vector<16x128xf32>
    %14 = math.tanh %13 : vector<16x128xf32>
    %cst_6 = arith.constant 1.000000e+00 : f32
    %15 = vector.broadcast %cst_6 : f32 to vector<16x128xf32>
    %16 = arith.addf %15, %14 : vector<16x128xf32>
    %cst_7 = arith.constant 5.000000e-01 : f32
    %17 = vector.broadcast %cst_7 : f32 to vector<16x128xf32>
    %18 = arith.mulf %17, %16 : vector<16x128xf32>
    %19 = arith.mulf %6, %18 : vector<16x128xf32>
    %c0_8 = arith.constant 0 : index
    %c0_9 = arith.constant 0 : index
    %20 = vector.load %arg6[%c0_8, %c0_9] : memref<16x128xf32, #tpu.memory_space<vmem>>, vector<16x128xf32>
    %21 = arith.truncf %19 : vector<16x128xf32> to vector<16x128xbf16>
    %c0_10 = arith.constant 0 : index
    %c0_11 = arith.constant 0 : index
    %22 = vector.load %arg4[%c0_10, %c0_11] : memref<128x128xbf16, #tpu.memory_space<vmem>>, vector<128x128xbf16>
    %cst_12 = arith.constant dense<0.000000e+00> : vector<16x128xf32>
    %23 = tpu.matmul %21, %22, %cst_12 {dimension_numbers = #tpu.dot_dimension_numbers<[1], [0], [0], [1], [0, 0, 1, 1], [], []>} : vector<16x128xbf16>, vector<128x128xbf16>, vector<16x128xf32> -> vector<16x128xf32>
    %24 = arith.addf %20, %23 : vector<16x128xf32>
    %c0_13 = arith.constant 0 : index
    %c0_14 = arith.constant 0 : index
    %25 = vector.load %arg6[%c0_13, %c0_14] : memref<16x128xf32, #tpu.memory_space<vmem>>, vector<16x128xf32>
    tpu.vector_store %arg6[%c0_13, %c0_14], %24 {strides = array<i32>} : memref<16x128xf32, #tpu.memory_space<vmem>>, vector<16x128xf32>,
    %c0_i32_15 = arith.constant 0 : i32
    %26 = arith.cmpi eq, %arg1, %c0_i32_15 : i32
    %27 = arith.extui %26 : i1 to i32
    %c0_i32_16 = arith.constant 0 : i32
    %28 = arith.cmpi ne, %27, %c0_i32_16 : i32
    scf.if %28 {
      %c0_17 = arith.constant 0 : index
      %c0_18 = arith.constant 0 : index
      %29 = vector.load %arg6[%c0_17, %c0_18] : memref<16x128xf32, #tpu.memory_space<vmem>>, vector<16x128xf32>
      %c0_19 = arith.constant 0 : index
      %c0_20 = arith.constant 0 : index
      %30 = vector.load %arg5[%c0_19, %c0_20] : memref<16x128xf32, #tpu.memory_space<vmem>>, vector<16x128xf32>
      tpu.vector_store %arg5[%c0_19, %c0_20], %29 {strides = array<i32>} : memref<16x128xf32, #tpu.memory_space<vmem>>, vector<16x128xf32>,
    } else {
    }
    return
  }
  func.func @transform_0(%arg0: i32, %arg1: i32) -> (i32, i32) {
    %c0_i32 = arith.constant 0 : i32
    %c0_i32_0 = arith.constant 0 : i32
    return %arg0, %c0_i32 : i32, i32
  }
  func.func @transform_1(%arg0: i32, %arg1: i32) -> (i32, i32) {
    %c0_i32 = arith.constant 0 : i32
    %c0_i32_0 = arith.constant 0 : i32
    return %c0_i32, %arg1 : i32, i32
  }
  func.func @transform_2(%arg0: i32, %arg1: i32) -> (i32, i32) {
    %c0_i32 = arith.constant 0 : i32
    %c0_i32_0 = arith.constant 0 : i32
    return %arg1, %c0_i32 : i32, i32
  }
  func.func @transform_3(%arg0: i32, %arg1: i32) -> (i32, i32) {
    %c0_i32 = arith.constant 0 : i32
    %c0_i32_0 = arith.constant 0 : i32
    return %arg0, %c0_i32 : i32, i32
  }
}

module attributes {stable_mosaic.version = 11 : i64} {
  func.func @_adapter_kernel(%arg0: i32, %arg1: i32, %arg2: memref<16x128xf32, #tpu.memory_space<vmem>>, %arg3: memref<128x128xbf16, #tpu.memory_space<vmem>>, %arg4: memref<128x128xbf16, #tpu.memory_space<vmem>>, %arg5: memref<16x128xf32, #tpu.memory_space<vmem>>, %arg6: memref<16x128xf32, #tpu.memory_space<vmem>>) attributes {dimension_semantics = [#tpu.dimension_semantics<parallel>, #tpu.dimension_semantics<arbitrary>], iteration_bounds = array<i64: 1, 1>, scalar_prefetch = 0 : i64, scratch_operands = 1 : i64, tpu.core_type = #tpu.core_type<tc>, window_params = [{transform_indices = @transform_0, window_bounds = array<i64: 16, 128>}, {transform_indices = @transform_1, window_bounds = array<i64: 128, 128>}, {transform_indices = @transform_2, window_bounds = array<i64: 128, 128>}, {transform_indices = @transform_3, window_bounds = array<i64: 16, 128>}]} {
    %c0_i32 = arith.constant 0 : i32
    %0 = arith.cmpi eq, %arg1, %c0_i32 : i32
    %1 = arith.extui %0 : i1 to i32
    %c0_i32_0 = arith.constant 0 : i32
    %2 = arith.cmpi ne, %1, %c0_i32_0 : i32
    scf.if %2 {
      %c0_17 = arith.constant 0 : index
      %c0_18 = arith.constant 0 : index
      %29 = vector.load %arg2[%c0_17, %c0_18] : memref<16x128xf32, #tpu.memory_space<vmem>>, vector<16x128xf32>
      %c0_19 = arith.constant 0 : index
      %c0_20 = arith.constant 0 : index
      %30 = vector.load %arg6[%c0_19, %c0_20] : memref<16x128xf32, #tpu.memory_space<vmem>>, vector<16x128xf32>
      tpu.vector_store %arg6[%c0_19, %c0_20], %29 {strides = array<i32>} : memref<16x128xf32, #tpu.memory_space<vmem>>, vector<16x128xf32>,
    } else {
    }
    %c0 = arith.constant 0 : index
    %c0_1 = arith.constant 0 : index
    %3 = vector.load %arg2[%c0, %c0_1] : memref<16x128xf32, #tpu.memory_space<vmem>>, vector<16x128xf32>
    %4 = arith.truncf %3 : vector<16x128xf32> to vector<16x128xbf16>
    %c0_2 = arith.constant 0 : index
    %c0_3 = arith.constant 0 : index
    %5 = vector.load %arg3[%c0_2, %c0_3] : memref<128x128xbf16, #tpu.memory_space<vmem>>, vector<128x128xbf16>
    %cst = arith.constant dense<0.000000e+00> : vector<16x128xf32>
    %6 = tpu.matmul %4, %5, %cst {dimension_numbers = #tpu.dot_dimension_numbers<[1], [0], [0], [1], [0, 0, 1, 1], [], []>} : vector<16x128xbf16>, vector<128x128xbf16>, vector<16x128xf32> -> vector<16x128xf32>
    %7 = arith.mulf %6, %6 : vector<16x128xf32>
    %8 = arith.mulf %6, %7 : vector<16x128xf32>
    %cst_4 = arith.constant 4.471500e-02 : f32
    %9 = vector.broadcast %cst_4 : f32 to vector<16x128xf32>
    %10 = arith.mulf %9, %8 : vector<16x128xf32>
    %11 = arith.addf %6, %10 : vector<16x128xf32>
    %cst_5 = arith.constant 0.797884583 : f32
    %12 = vector.broadcast %cst_5 : f32 to vector<16x128xf32>
    %13 = arith.mulf %12, %11 : vector<16x128xf32>
    %14 = math.tanh %13 : vector<16x128xf32>
    %cst_6 = arith.constant 1.000000e+00 : f32
    %15 = vector.broadcast %cst_6 : f32 to vector<16x128xf32>
    %16 = arith.addf %15, %14 : vector<16x128xf32>
    %cst_7 = arith.constant 5.000000e-01 : f32
    %17 = vector.broadcast %cst_7 : f32 to vector<16x128xf32>
    %18 = arith.mulf %17, %16 : vector<16x128xf32>
    %19 = arith.mulf %6, %18 : vector<16x128xf32>
    %c0_8 = arith.constant 0 : index
    %c0_9 = arith.constant 0 : index
    %20 = vector.load %arg6[%c0_8, %c0_9] : memref<16x128xf32, #tpu.memory_space<vmem>>, vector<16x128xf32>
    %21 = arith.truncf %19 : vector<16x128xf32> to vector<16x128xbf16>
    %c0_10 = arith.constant 0 : index
    %c0_11 = arith.constant 0 : index
    %22 = vector.load %arg4[%c0_10, %c0_11] : memref<128x128xbf16, #tpu.memory_space<vmem>>, vector<128x128xbf16>
    %cst_12 = arith.constant dense<0.000000e+00> : vector<16x128xf32>
    %23 = tpu.matmul %21, %22, %cst_12 {dimension_numbers = #tpu.dot_dimension_numbers<[1], [0], [0], [1], [0, 0, 1, 1], [], []>} : vector<16x128xbf16>, vector<128x128xbf16>, vector<16x128xf32> -> vector<16x128xf32>
    %24 = arith.addf %20, %23 : vector<16x128xf32>
    %c0_13 = arith.constant 0 : index
    %c0_14 = arith.constant 0 : index
    %25 = vector.load %arg6[%c0_13, %c0_14] : memref<16x128xf32, #tpu.memory_space<vmem>>, vector<16x128xf32>
    tpu.vector_store %arg6[%c0_13, %c0_14], %24 {strides = array<i32>} : memref<16x128xf32, #tpu.memory_space<vmem>>, vector<16x128xf32>,
    %c0_i32_15 = arith.constant 0 : i32
    %26 = arith.cmpi eq, %arg1, %c0_i32_15 : i32
    %27 = arith.extui %26 : i1 to i32
    %c0_i32_16 = arith.constant 0 : i32
    %28 = arith.cmpi ne, %27, %c0_i32_16 : i32
    scf.if %28 {
      %c0_17 = arith.constant 0 : index
      %c0_18 = arith.constant 0 : index
      %29 = vector.load %arg6[%c0_17, %c0_18] : memref<16x128xf32, #tpu.memory_space<vmem>>, vector<16x128xf32>
      %c0_19 = arith.constant 0 : index
      %c0_20 = arith.constant 0 : index
      %30 = vector.load %arg5[%c0_19, %c0_20] : memref<16x128xf32, #tpu.memory_space<vmem>>, vector<16x128xf32>
      tpu.vector_store %arg5[%c0_19, %c0_20], %29 {strides = array<i32>} : memref<16x128xf32, #tpu.memory_space<vmem>>, vector<16x128xf32>,
    } else {
    }
    return
  }
  func.func @transform_0(%arg0: i32, %arg1: i32) -> (i32, i32) {
    %c0_i32 = arith.constant 0 : i32
    %c0_i32_0 = arith.constant 0 : i32
    return %arg0, %c0_i32 : i32, i32
  }
  func.func @transform_1(%arg0: i32, %arg1: i32) -> (i32, i32) {
    %c0_i32 = arith.constant 0 : i32
    %c0_i32_0 = arith.constant 0 : i32
    return %c0_i32, %arg1 : i32, i32
  }
  func.func @transform_2(%arg0: i32, %arg1: i32) -> (i32, i32) {
    %c0_i32 = arith.constant 0 : i32
    %c0_i32_0 = arith.constant 0 : i32
    return %arg1, %c0_i32 : i32, i32
  }
  func.func @transform_3(%arg0: i32, %arg1: i32) -> (i32, i32) {
    %c0_i32 = arith.constant 0 : i32
    %c0_i32_0 = arith.constant 0 : i32
    return %arg0, %c0_i32 : i32, i32
  }
}

</mosaic_0001>

<llo_original>
// kernel: tpu_custom_call.1
$region0: #{tpu_custom_call.1}
  #allocation0 [shape = 'u32[]', space=smem, size = 0x4, offset = 0x4, fixed_abs, tag = 'smem constant byte address 0x4 - core index']
  #allocation1 [shape = 'u32[144,128]{1,0:T(1,128)}', space=vmem, size = 0x12000, scoped, tag = 'internal scratch']
  #allocation2 [shape = 'f32[16,128]{1,0:T(8,128)}', space=vmem, size = 0x2000, scoped, tag = 'scratch operand']
  %s0 = inlined_call_operand.hbm [shape: f32[16,128], index: 0, kind: input, shape index: {}]
  %s1 = inlined_call_operand.hbm [shape: bf16[128,128], index: 1, kind: input, shape index: {}]
  %s2 = inlined_call_operand.hbm [shape: bf16[128,128], index: 2, kind: input, shape index: {}]
  %s3 = inlined_call_operand.hbm [shape: f32[16,128], index: 3, kind: output, shape index: {}]
  %s4 = sld [smem:[#allocation0]]
  $region42: #{tpu_custom_call.1} parent=0
    _
  %s6 = ssub.s32 1, %s4
  %s7 = scalar_select 0, %s6, %s4
  $region1: #{tpu_custom_call.1} parent=0
    #allocation3 [shape = 'u8[8192]{0}', space=vmem, size = 0x2000, scoped, tag = 'input window, operand 0, single buffered']
    #allocation4 [shape = 's32[1]{0}', space=sflag, size = 0x4, scoped, tag = 'scoped memory for tpu_custom_call.1']
    #allocation5 [shape = 's32[1]{0}', space=sflag, size = 0x4, scoped, tag = 'scoped memory for tpu_custom_call.1']
    #allocation6 [shape = 'u8[32768]{0}', space=vmem, size = 0x8000, scoped, tag = 'input window, operand 1, single buffered']
    #allocation7 [shape = 's32[1]{0}', space=sflag, size = 0x4, scoped, tag = 'scoped memory for tpu_custom_call.1']
    #allocation8 [shape = 'u8[32768]{0}', space=vmem, size = 0x8000, scoped, tag = 'input window, operand 2, single buffered']
    #allocation9 [shape = 'u8[8192]{0}', space=vmem, size = 0x2000, scoped, tag = 'output window, operand 0, single buffered']
    %8 = vsyncpa [#allocation4], 0
    %9 = vsyncpa [#allocation7], 0
    %10 = vsyncpa [#allocation5], 0
    // Predicated region
    $region2: #{tpu_custom_call.1} parent=1 // pred_check
      _
    $region3: #{tpu_custom_call.1} parent=1 // pred_check_branch
      %12 = sbr.rel (0) target = $region5
    $region4: #{tpu_custom_call.1} parent=1 // pred_region
      %s14 = ssub.s32 256, 256
      %15 = vsyncadd [#allocation4], %s14
      %s16 = sshll.u32 [#allocation3], 4
      %s17 = int_to_ptr.vmem [resolvable:$true] %s16
      %22 = dma.hbm_to_vmem [thread:$0]  %s0, 256, %s17, [#allocation4], 128, 128, 8
    $region5: #{tpu_custom_call.1} parent=1 // pred_fallthru
      _
    // Predicated region
    $region6: #{tpu_custom_call.1} parent=1 // pred_check
      _
    $region7: #{tpu_custom_call.1} parent=1 // pred_check_branch
      %24 = sbr.rel (0) target = $region9
    $region8: #{tpu_custom_call.1} parent=1 // pred_region
      %s26 = ssub.s32 1024, 1024
      %27 = vsyncadd [#allocation7], %s26
      %s28 = sshll.u32 [#allocation6], 4
      %s29 = int_to_ptr.vmem [resolvable:$true] %s28
      %34 = dma.hbm_to_vmem [thread:$0]  %s1, 1024, %s29, [#allocation7], 64, 64, 4
    $region9: #{tpu_custom_call.1} parent=1 // pred_fallthru
      _
    // Predicated region
    $region10: #{tpu_custom_call.1} parent=1 // pred_check
      _
    $region11: #{tpu_custom_call.1} parent=1 // pred_check_branch
      %36 = sbr.rel (0) target = $region13
    $region12: #{tpu_custom_call.1} parent=1 // pred_region
      %s38 = ssub.s32 1024, 1024
      %39 = vsyncadd [#allocation7], %s38
      %s40 = sshll.u32 [#allocation8], 4
      %s41 = int_to_ptr.vmem [resolvable:$true] %s40
      %46 = dma.hbm_to_vmem [thread:$0]  %s2, 1024, %s41, [#allocation7], 64, 64, 4
    $region13: #{tpu_custom_call.1} parent=1 // pred_fallthru
      _
    // Predicated region
    $region14: #{tpu_custom_call.1} parent=1 // pred_check
      _
    $region15: #{tpu_custom_call.1} parent=1 // pred_check_branch
      %48 = sbr.rel (0) target = $region17
    $region16: #{tpu_custom_call.1} parent=1 // pred_region
      %49 = dma.done [#allocation4], 256
    $region17: #{tpu_custom_call.1} parent=1 // pred_fallthru
      _
    // Predicated region
    $region18: #{tpu_custom_call.1} parent=1 // pred_check
      _
    $region19: #{tpu_custom_call.1} parent=1 // pred_check_branch
      %51 = sbr.rel (0) target = $region21
    $region20: #{tpu_custom_call.1} parent=1 // pred_region
      %52 = dma.done [#allocation7], 1024
    $region21: #{tpu_custom_call.1} parent=1 // pred_fallthru
      _
    // Predicated region
    $region22: #{tpu_custom_call.1} parent=1 // pred_check
      _
    $region23: #{tpu_custom_call.1} parent=1 // pred_check_branch
      %54 = sbr.rel (0) target = $region25
    $region24: #{tpu_custom_call.1} parent=1 // pred_region
      %55 = dma.done [#allocation7], 1024
    $region25: #{tpu_custom_call.1} parent=1 // pred_fallthru
      _
    %p57 = scmp.eq.s32.totalorder 0, 0
    // Predicated region
    $region26: #{tpu_custom_call.1} parent=1 // pred_check
      %p58 = pneg %p57
    $region27: #{tpu_custom_call.1} parent=1 // pred_check_branch
      %60 = sbr.rel (%p58) target = $region29
    $region28: #{tpu_custom_call.1} parent=1 // pred_region
      %v61 = vld [vmem:[#allocation3] sm:$0xff]
      %v62 = vld [vmem:[#allocation3 + $0x8] sm:$0xff]
      %63 = vst [vmem:[#allocation2] sm:$0xff] %v61
      %64 = vst [vmem:[#allocation2 + $0x8] sm:$0xff] %v62
    $region29: #{tpu_custom_call.1} parent=1 // pred_fallthru
      _
    %v65 = vld [vmem:[#allocation3] sm:$0xff]
    %v66 = vld [vmem:[#allocation3 + $0x8] sm:$0xff]
    %v67 = vpack.c.bf16 %v66, %v65
    %v68 = vld [vmem:[#allocation6] sm:$0xf]
    %v69 = vld [vmem:[#allocation6 + $0x4] sm:$0xf]
    %v70 = vld [vmem:[#allocation6 + $0x8] sm:$0xf]
    %v71 = vld [vmem:[#allocation6 + $0xc] sm:$0xf]
    %v72 = vld [vmem:[#allocation6 + $0x10] sm:$0xf]
    %v73 = vld [vmem:[#allocation6 + $0x14] sm:$0xf]
    %v74 = vld [vmem:[#allocation6 + $0x18] sm:$0xf]
    %v75 = vld [vmem:[#allocation6 + $0x1c] sm:$0xf]
    %v76 = vld [vmem:[#allocation6 + $0x20] sm:$0xf]
    %v77 = vld [vmem:[#allocation6 + $0x24] sm:$0xf]
    %v78 = vld [vmem:[#allocation6 + $0x28] sm:$0xf]
    %v79 = vld [vmem:[#allocation6 + $0x2c] sm:$0xf]
    %v80 = vld [vmem:[#allocation6 + $0x30] sm:$0xf]
    %v81 = vld [vmem:[#allocation6 + $0x34] sm:$0xf]
    %v82 = vld [vmem:[#allocation6 + $0x38] sm:$0xf]
    %v83 = vld [vmem:[#allocation6 + $0x3c] sm:$0xf]
    %v100 = vunpack.c.l.b16 %v68
    %v101 = vunpack.c.l.b16 %v69
    %v102 = vunpack.c.l.b16 %v70
    %v103 = vunpack.c.l.b16 %v71
    %v104 = vunpack.c.l.b16 %v72
    %v105 = vunpack.c.l.b16 %v73
    %v106 = vunpack.c.l.b16 %v74
    %v107 = vunpack.c.l.b16 %v75
    %v108 = vunpack.c.l.b16 %v76
    %v109 = vunpack.c.l.b16 %v77
    %v110 = vunpack.c.l.b16 %v78
    %v111 = vunpack.c.l.b16 %v79
    %v112 = vunpack.c.l.b16 %v80
    %v113 = vunpack.c.l.b16 %v81
    %v114 = vunpack.c.l.b16 %v82
    %v115 = vunpack.c.l.b16 %v83
    %v116 = vpack.c.b16 %v101, %v100
    %v117 = vpack.c.b16 %v103, %v102
    %v118 = vpack.c.b16 %v105, %v104
    %v119 = vpack.c.b16 %v107, %v106
    %v120 = vpack.c.b16 %v109, %v108
    %v121 = vpack.c.b16 %v111, %v110
    %v122 = vpack.c.b16 %v113, %v112
    %v123 = vpack.c.b16 %v115, %v114
    %132 = vmatprep.subr.bf16.mxu0 0
    %133 = vmatpush1.bf16.msra.mxu0 %v123
    %134 = vmatprep.subr.bf16.mxu0 0
    %135 = vmatpush1.bf16.msra.mxu0 %v122
    %136 = vmatprep.subr.bf16.mxu0 0
    %137 = vmatpush1.bf16.msra.mxu0 %v121
    %138 = vmatprep.subr.bf16.mxu0 0
    %139 = vmatpush1.bf16.msra.mxu0 %v120
    %140 = vmatprep.subr.bf16.mxu0 0
    %141 = vmatpush1.bf16.msra.mxu0 %v119
    %142 = vmatprep.subr.bf16.mxu0 0
    %143 = vmatpush1.bf16.msra.mxu0 %v118
    %144 = vmatprep.subr.bf16.mxu0 0
    %145 = vmatpush1.bf16.msra.mxu0 %v117
    %146 = vmatprep.subr.bf16.mxu0 0
    %147 = vmatpush1.bf16.msra.mxu0 %v116
    %148 = vmatprep.subr.bf16.mxu0 0
    %149 = vmatpush2.bf16.msra.mxu0 0
    %150 = vmatprep.subr.bf16.mxu0 0
    %151 = vmatpush2.bf16.msra.mxu0 0
    %152 = vmatprep.subr.bf16.mxu0 0
    %153 = vmatpush2.bf16.msra.mxu0 0
    %154 = vmatprep.subr.bf16.mxu0 0
    %155 = vmatpush2.bf16.msra.mxu0 0
    %156 = vmatprep.subr.bf16.mxu0 0
    %157 = vmatpush2.bf16.msra.mxu0 0
    %158 = vmatprep.subr.bf16.mxu0 0
    %159 = vmatpush2.bf16.msra.mxu0 0
    %160 = vmatprep.subr.bf16.mxu0 0
    %161 = vmatpush2.bf16.msra.mxu0 0
    %162 = vmatprep.subr.bf16.mxu0 0
    %163 = vmatpush2.bf16.msra.mxu0 0
    %164 = vmatprep.mubr.bf16.mxu0 0
    %165 = vmatmul.mubr.bf16.gmra.mxu0 %v67
    %v166 = vpop.f32.mrf.mxu0
    %v167 = vadd.f32 0.0, %v166
    %v168 = vpop.f32.mrf.mxu0
    %v169 = vpop.f32.mrf.mxu0
    %v170 = vadd.f32 0.0, %v169
    %v171 = vpop.f32.mrf.mxu0
    %172 = vdwg.mxu0
    %v173 = vmul.f32 %v167, %v167
    %v174 = vmul.f32 %v170, %v170
    %v175 = vmul.f32 %v167, %v173
    %v176 = vmul.f32 %v170, %v174
    %v177 = vmul.f32 %v175, 0.044715
    %v178 = vmul.f32 %v176, 0.044715
    %v179 = vadd.f32 %v167, %v177
    %v180 = vadd.f32 %v170, %v178
    %v181 = vmul.f32 %v179, 0.7978846
    %v182 = vmul.f32 %v180, 0.7978846
    %v183 = vtanh.pop %v181
    %v184 = vtanh.pop %v182
    %v185 = vadd.f32 %v183, 1.0
    %v186 = vadd.f32 %v184, 1.0
    %v187 = vmul.f32 %v185, 0.5
    %v188 = vmul.f32 %v186, 0.5
    %v189 = vmul.f32 %v167, %v187
    %v190 = vmul.f32 %v170, %v188
    %v191 = vld [vmem:[#allocation2] sm:$0xff]
    %v192 = vld [vmem:[#allocation2 + $0x8] sm:$0xff]
    %v193 = vpack.c.bf16 %v190, %v189
    %v194 = vld [vmem:[#allocation8] sm:$0xf]
    %v195 = vld [vmem:[#allocation8 + $0x4] sm:$0xf]
    %v196 = vld [vmem:[#allocation8 + $0x8] sm:$0xf]
    %v197 = vld [vmem:[#allocation8 + $0xc] sm:$0xf]
    %v198 = vld [vmem:[#allocation8 + $0x10] sm:$0xf]
    %v199 = vld [vmem:[#allocation8 + $0x14] sm:$0xf]
    %v200 = vld [vmem:[#allocation8 + $0x18] sm:$0xf]
    %v201 = vld [vmem:[#allocation8 + $0x1c] sm:$0xf]
    %v202 = vld [vmem:[#allocation8 + $0x20] sm:$0xf]
    %v203 = vld [vmem:[#allocation8 + $0x24] sm:$0xf]
    %v204 = vld [vmem:[#allocation8 + $0x28] sm:$0xf]
    %v205 = vld [vmem:[#allocation8 + $0x2c] sm:$0xf]
    %v206 = vld [vmem:[#allocation8 + $0x30] sm:$0xf]
    %v207 = vld [vmem:[#allocation8 + $0x34] sm:$0xf]
    %v208 = vld [vmem:[#allocation8 + $0x38] sm:$0xf]
    %v209 = vld [vmem:[#allocation8 + $0x3c] sm:$0xf]
    %v226 = vunpack.c.l.b16 %v194
    %v227 = vunpack.c.l.b16 %v195
    %v228 = vunpack.c.l.b16 %v196
    %v229 = vunpack.c.l.b16 %v197
    %v230 = vunpack.c.l.b16 %v198
    %v231 = vunpack.c.l.b16 %v199
    %v232 = vunpack.c.l.b16 %v200
    %v233 = vunpack.c.l.b16 %v201
    %v234 = vunpack.c.l.b16 %v202
    %v235 = vunpack.c.l.b16 %v203
    %v236 = vunpack.c.l.b16 %v204
    %v237 = vunpack.c.l.b16 %v205
    %v238 = vunpack.c.l.b16 %v206
    %v239 = vunpack.c.l.b16 %v207
    %v240 = vunpack.c.l.b16 %v208
    %v241 = vunpack.c.l.b16 %v209
    %v242 = vpack.c.b16 %v227, %v226
    %v243 = vpack.c.b16 %v229, %v228
    %v244 = vpack.c.b16 %v231, %v230
    %v245 = vpack.c.b16 %v233, %v232
    %v246 = vpack.c.b16 %v235, %v234
    %v247 = vpack.c.b16 %v237, %v236
    %v248 = vpack.c.b16 %v239, %v238
    %v249 = vpack.c.b16 %v241, %v240
    %258 = vmatprep.subr.bf16.mxu0 0
    %259 = vmatpush1.bf16.msra.mxu0 %v249
    %260 = vmatprep.subr.bf16.mxu0 0
    %261 = vmatpush1.bf16.msra.mxu0 %v248
    %262 = vmatprep.subr.bf16.mxu0 0
    %263 = vmatpush1.bf16.msra.mxu0 %v247
    %264 = vmatprep.subr.bf16.mxu0 0
    %265 = vmatpush1.bf16.msra.mxu0 %v246
    %266 = vmatprep.subr.bf16.mxu0 0
    %267 = vmatpush1.bf16.msra.mxu0 %v245
    %268 = vmatprep.subr.bf16.mxu0 0
    %269 = vmatpush1.bf16.msra.mxu0 %v244
    %270 = vmatprep.subr.bf16.mxu0 0
    %271 = vmatpush1.bf16.msra.mxu0 %v243
    %272 = vmatprep.subr.bf16.mxu0 0
    %273 = vmatpush1.bf16.msra.mxu0 %v242
    %274 = vmatprep.subr.bf16.mxu0 0
    %275 = vmatpush2.bf16.msra.mxu0 0
    %276 = vmatprep.subr.bf16.mxu0 0
    %277 = vmatpush2.bf16.msra.mxu0 0
    %278 = vmatprep.subr.bf16.mxu0 0
    %279 = vmatpush2.bf16.msra.mxu0 0
    %280 = vmatprep.subr.bf16.mxu0 0
    %281 = vmatpush2.bf16.msra.mxu0 0
    %282 = vmatprep.subr.bf16.mxu0 0
    %283 = vmatpush2.bf16.msra.mxu0 0
    %284 = vmatprep.subr.bf16.mxu0 0
    %285 = vmatpush2.bf16.msra.mxu0 0
    %286 = vmatprep.subr.bf16.mxu0 0
    %287 = vmatpush2.bf16.msra.mxu0 0
    %288 = vmatprep.subr.bf16.mxu0 0
    %289 = vmatpush2.bf16.msra.mxu0 0
    %290 = vmatprep.mubr.bf16.mxu0 0
    %291 = vmatmul.mubr.bf16.gmra.mxu0 %v193
    %v292 = vpop.f32.mrf.mxu0
    %v293 = vadd.f32 0.0, %v292
    %v294 = vpop.f32.mrf.mxu0
    %v295 = vpop.f32.mrf.mxu0
    %v296 = vadd.f32 0.0, %v295
    %v297 = vpop.f32.mrf.mxu0
    %298 = vdwg.mxu0
    %v299 = vadd.f32 %v191, %v293
    %v300 = vadd.f32 %v192, %v296
    %301 = vst [vmem:[#allocation2] sm:$0xff] %v299
    %302 = vst [vmem:[#allocation2 + $0x8] sm:$0xff] %v300
    // Predicated region
    $region30: #{tpu_custom_call.1} parent=1 // pred_check
      %p303 = pneg %p57
    $region31: #{tpu_custom_call.1} parent=1 // pred_check_branch
      %305 = sbr.rel (%p303) target = $region33
    $region32: #{tpu_custom_call.1} parent=1 // pred_region
      %v306 = vld [vmem:[#allocation2] sm:$0xff]
      %v307 = vld [vmem:[#allocation2 + $0x8] sm:$0xff]
      %308 = vst [vmem:[#allocation9] sm:$0xff] %v306
      %309 = vst [vmem:[#allocation9 + $0x8] sm:$0xff] %v307
    $region33: #{tpu_custom_call.1} parent=1 // pred_fallthru
      _
    // Predicated region
    $region34: #{tpu_custom_call.1} parent=1 // pred_check
      _
    $region35: #{tpu_custom_call.1} parent=1 // pred_check_branch
      %311 = sbr.rel (0) target = $region37
    $region36: #{tpu_custom_call.1} parent=1 // pred_region
      %s313 = ssub.s32 256, 256
      %314 = vsyncadd [#allocation5], %s313
      %s315 = sshll.u32 [#allocation9], 4
      %s316 = int_to_ptr.vmem [resolvable:$true] %s315
      %321 = dma.vmem_to_hbm [thread:$0]  %s316, 256, %s3, [#allocation5], 128, 128, 8
    $region37: #{tpu_custom_call.1} parent=1 // pred_fallthru
      _
    // Predicated region
    $region38: #{tpu_custom_call.1} parent=1 // pred_check
      _
    $region39: #{tpu_custom_call.1} parent=1 // pred_check_branch
      %323 = sbr.rel (0) target = $region41
    $region40: #{tpu_custom_call.1} parent=1 // pred_region
      %324 = dma.done [#allocation5], 256
    $region41: #{tpu_custom_call.1} parent=1 // pred_fallthru
      _
    %325 = vsyncpa [#allocation4], 1
    %326 = vsyncpa [#allocation7], 1
    %327 = vsyncpa [#allocation5], 1

// kernel: tpu_custom_call.1
$region0: #{tpu_custom_call.1}
  #allocation0 [shape = 'u32[]', space=smem, size = 0x4, offset = 0x4, fixed_abs, tag = 'smem constant byte address 0x4 - core index']
  #allocation1 [shape = 'u32[144,128]{1,0:T(1,128)}', space=vmem, size = 0x12000, scoped, tag = 'internal scratch']
  #allocation2 [shape = 'f32[16,128]{1,0:T(8,128)}', space=vmem, size = 0x2000, scoped, tag = 'scratch operand']
  %s0 = inlined_call_operand.hbm [shape: f32[16,128], index: 0, kind: input, shape index: {}]
  %s1 = inlined_call_operand.hbm [shape: bf16[128,128], index: 1, kind: input, shape index: {}]
  %s2 = inlined_call_operand.hbm [shape: bf16[128,128], index: 2, kind: input, shape index: {}]
  %s3 = inlined_call_operand.hbm [shape: f32[16,128], index: 3, kind: output, shape index: {}]
  %s4 = sld [smem:[#allocation0]]
  $region42: #{tpu_custom_call.1} parent=0
    _
  %s6 = ssub.s32 1, %s4
  %s7 = scalar_select 0, %s6, %s4
  $region1: #{tpu_custom_call.1} parent=0
    #allocation3 [shape = 'u8[8192]{0}', space=vmem, size = 0x2000, scoped, tag = 'input window, operand 0, single buffered']
    #allocation4 [shape = 's32[1]{0}', space=sflag, size = 0x4, scoped, tag = 'scoped memory for tpu_custom_call.1']
    #allocation5 [shape = 's32[1]{0}', space=sflag, size = 0x4, scoped, tag = 'scoped memory for tpu_custom_call.1']
    #allocation6 [shape = 'u8[32768]{0}', space=vmem, size = 0x8000, scoped, tag = 'input window, operand 1, single buffered']
    #allocation7 [shape = 's32[1]{0}', space=sflag, size = 0x4, scoped, tag = 'scoped memory for tpu_custom_call.1']
    #allocation8 [shape = 'u8[32768]{0}', space=vmem, size = 0x8000, scoped, tag = 'input window, operand 2, single buffered']
    #allocation9 [shape = 'u8[8192]{0}', space=vmem, size = 0x2000, scoped, tag = 'output window, operand 0, single buffered']
    %8 = vsyncpa [#allocation4], 0
    %9 = vsyncpa [#allocation7], 0
    %10 = vsyncpa [#allocation5], 0
    // Predicated region
    $region2: #{tpu_custom_call.1} parent=1 // pred_check
      _
    $region3: #{tpu_custom_call.1} parent=1 // pred_check_branch
      %12 = sbr.rel (0) target = $region5
    $region4: #{tpu_custom_call.1} parent=1 // pred_region
      %s14 = ssub.s32 256, 256
      %15 = vsyncadd [#allocation4], %s14
      %s16 = sshll.u32 [#allocation3], 4
      %s17 = int_to_ptr.vmem [resolvable:$true] %s16
      %22 = dma.hbm_to_vmem [thread:$0]  %s0, 256, %s17, [#allocation4], 128, 128, 8
    $region5: #{tpu_custom_call.1} parent=1 // pred_fallthru
      _
    // Predicated region
    $region6: #{tpu_custom_call.1} parent=1 // pred_check
      _
    $region7: #{tpu_custom_call.1} parent=1 // pred_check_branch
      %24 = sbr.rel (0) target = $region9
    $region8: #{tpu_custom_call.1} parent=1 // pred_region
      %s26 = ssub.s32 1024, 1024
      %27 = vsyncadd [#allocation7], %s26
      %s28 = sshll.u32 [#allocation6], 4
      %s29 = int_to_ptr.vmem [resolvable:$true] %s28
      %34 = dma.hbm_to_vmem [thread:$0]  %s1, 1024, %s29, [#allocation7], 64, 64, 4
    $region9: #{tpu_custom_call.1} parent=1 // pred_fallthru
      _
    // Predicated region
    $region10: #{tpu_custom_call.1} parent=1 // pred_check
      _
    $region11: #{tpu_custom_call.1} parent=1 // pred_check_branch
      %36 = sbr.rel (0) target = $region13
    $region12: #{tpu_custom_call.1} parent=1 // pred_region
      %s38 = ssub.s32 1024, 1024
      %39 = vsyncadd [#allocation7], %s38
      %s40 = sshll.u32 [#allocation8], 4
      %s41 = int_to_ptr.vmem [resolvable:$true] %s40
      %46 = dma.hbm_to_vmem [thread:$0]  %s2, 1024, %s41, [#allocation7], 64, 64, 4
    $region13: #{tpu_custom_call.1} parent=1 // pred_fallthru
      _
    // Predicated region
    $region14: #{tpu_custom_call.1} parent=1 // pred_check
      _
    $region15: #{tpu_custom_call.1} parent=1 // pred_check_branch
      %48 = sbr.rel (0) target = $region17
    $region16: #{tpu_custom_call.1} parent=1 // pred_region
      %49 = dma.done [#allocation4], 256
    $region17: #{tpu_custom_call.1} parent=1 // pred_fallthru
      _
    // Predicated region
    $region18: #{tpu_custom_call.1} parent=1 // pred_check
      _
    $region19: #{tpu_custom_call.1} parent=1 // pred_check_branch
      %51 = sbr.rel (0) target = $region21
    $region20: #{tpu_custom_call.1} parent=1 // pred_region
      %52 = dma.done [#allocation7], 1024
    $region21: #{tpu_custom_call.1} parent=1 // pred_fallthru
      _
    // Predicated region
    $region22: #{tpu_custom_call.1} parent=1 // pred_check
      _
    $region23: #{tpu_custom_call.1} parent=1 // pred_check_branch
      %54 = sbr.rel (0) target = $region25
    $region24: #{tpu_custom_call.1} parent=1 // pred_region
      %55 = dma.done [#allocation7], 1024
    $region25: #{tpu_custom_call.1} parent=1 // pred_fallthru
      _
    %p57 = scmp.eq.s32.totalorder 0, 0
    // Predicated region
    $region26: #{tpu_custom_call.1} parent=1 // pred_check
      %p58 = pneg %p57
    $region27: #{tpu_custom_call.1} parent=1 // pred_check_branch
      %60 = sbr.rel (%p58) target = $region29
    $region28: #{tpu_custom_call.1} parent=1 // pred_region
      %v61 = vld [vmem:[#allocation3] sm:$0xff]
      %v62 = vld [vmem:[#allocation3 + $0x8] sm:$0xff]
      %63 = vst [vmem:[#allocation2] sm:$0xff] %v61
      %64 = vst [vmem:[#allocation2 + $0x8] sm:$0xff] %v62
    $region29: #{tpu_custom_call.1} parent=1 // pred_fallthru
      _
    %v65 = vld [vmem:[#allocation3] sm:$0xff]
    %v66 = vld [vmem:[#allocation3 + $0x8] sm:$0xff]
    %v67 = vpack.c.bf16 %v66, %v65
    %v68 = vld [vmem:[#allocation6] sm:$0xf]
    %v69 = vld [vmem:[#allocation6 + $0x4] sm:$0xf]
    %v70 = vld [vmem:[#allocation6 + $0x8] sm:$0xf]
    %v71 = vld [vmem:[#allocation6 + $0xc] sm:$0xf]
    %v72 = vld [vmem:[#allocation6 + $0x10] sm:$0xf]
    %v73 = vld [vmem:[#allocation6 + $0x14] sm:$0xf]
    %v74 = vld [vmem:[#allocation6 + $0x18] sm:$0xf]
    %v75 = vld [vmem:[#allocation6 + $0x1c] sm:$0xf]
    %v76 = vld [vmem:[#allocation6 + $0x20] sm:$0xf]
    %v77 = vld [vmem:[#allocation6 + $0x24] sm:$0xf]
    %v78 = vld [vmem:[#allocation6 + $0x28] sm:$0xf]
    %v79 = vld [vmem:[#allocation6 + $0x2c] sm:$0xf]
    %v80 = vld [vmem:[#allocation6 + $0x30] sm:$0xf]
    %v81 = vld [vmem:[#allocation6 + $0x34] sm:$0xf]
    %v82 = vld [vmem:[#allocation6 + $0x38] sm:$0xf]
    %v83 = vld [vmem:[#allocation6 + $0x3c] sm:$0xf]
    %v100 = vunpack.c.l.b16 %v68
    %v101 = vunpack.c.l.b16 %v69
    %v102 = vunpack.c.l.b16 %v70
    %v103 = vunpack.c.l.b16 %v71
    %v104 = vunpack.c.l.b16 %v72
    %v105 = vunpack.c.l.b16 %v73
    %v106 = vunpack.c.l.b16 %v74
    %v107 = vunpack.c.l.b16 %v75
    %v108 = vunpack.c.l.b16 %v76
    %v109 = vunpack.c.l.b16 %v77
    %v110 = vunpack.c.l.b16 %v78
    %v111 = vunpack.c.l.b16 %v79
    %v112 = vunpack.c.l.b16 %v80
    %v113 = vunpack.c.l.b16 %v81
    %v114 = vunpack.c.l.b16 %v82
    %v115 = vunpack.c.l.b16 %v83
    %v116 = vpack.c.b16 %v101, %v100
    %v117 = vpack.c.b16 %v103, %v102
    %v118 = vpack.c.b16 %v105, %v104
    %v119 = vpack.c.b16 %v107, %v106
    %v120 = vpack.c.b16 %v109, %v108
    %v121 = vpack.c.b16 %v111, %v110
    %v122 = vpack.c.b16 %v113, %v112
    %v123 = vpack.c.b16 %v115, %v114
    %132 = vmatprep.subr.bf16.mxu0 0
    %133 = vmatpush1.bf16.msra.mxu0 %v123
    %134 = vmatprep.subr.bf16.mxu0 0
    %135 = vmatpush1.bf16.msra.mxu0 %v122
    %136 = vmatprep.subr.bf16.mxu0 0
    %137 = vmatpush1.bf16.msra.mxu0 %v121
    %138 = vmatprep.subr.bf16.mxu0 0
    %139 = vmatpush1.bf16.msra.mxu0 %v120
    %140 = vmatprep.subr.bf16.mxu0 0
    %141 = vmatpush1.bf16.msra.mxu0 %v119
    %142 = vmatprep.subr.bf16.mxu0 0
    %143 = vmatpush1.bf16.msra.mxu0 %v118
    %144 = vmatprep.subr.bf16.mxu0 0
    %145 = vmatpush1.bf16.msra.mxu0 %v117
    %146 = vmatprep.subr.bf16.mxu0 0
    %147 = vmatpush1.bf16.msra.mxu0 %v116
    %148 = vmatprep.subr.bf16.mxu0 0
    %149 = vmatpush2.bf16.msra.mxu0 0
    %150 = vmatprep.subr.bf16.mxu0 0
    %151 = vmatpush2.bf16.msra.mxu0 0
    %152 = vmatprep.subr.bf16.mxu0 0
    %153 = vmatpush2.bf16.msra.mxu0 0
    %154 = vmatprep.subr.bf16.mxu0 0
    %155 = vmatpush2.bf16.msra.mxu0 0
    %156 = vmatprep.subr.bf16.mxu0 0
    %157 = vmatpush2.bf16.msra.mxu0 0
    %158 = vmatprep.subr.bf16.mxu0 0
    %159 = vmatpush2.bf16.msra.mxu0 0
    %160 = vmatprep.subr.bf16.mxu0 0
    %161 = vmatpush2.bf16.msra.mxu0 0
    %162 = vmatprep.subr.bf16.mxu0 0
    %163 = vmatpush2.bf16.msra.mxu0 0
    %164 = vmatprep.mubr.bf16.mxu0 0
    %165 = vmatmul.mubr.bf16.gmra.mxu0 %v67
    %v166 = vpop.f32.mrf.mxu0
    %v167 = vadd.f32 0.0, %v166
    %v168 = vpop.f32.mrf.mxu0
    %v169 = vpop.f32.mrf.mxu0
    %v170 = vadd.f32 0.0, %v169
    %v171 = vpop.f32.mrf.mxu0
    %172 = vdwg.mxu0
    %v173 = vmul.f32 %v167, %v167
    %v174 = vmul.f32 %v170, %v170
    %v175 = vmul.f32 %v167, %v173
    %v176 = vmul.f32 %v170, %v174
    %v177 = vmul.f32 %v175, 0.044715
    %v178 = vmul.f32 %v176, 0.044715
    %v179 = vadd.f32 %v167, %v177
    %v180 = vadd.f32 %v170, %v178
    %v181 = vmul.f32 %v179, 0.7978846
    %v182 = vmul.f32 %v180, 0.7978846
    %v183 = vtanh.pop %v181
    %v184 = vtanh.pop %v182
    %v185 = vadd.f32 %v183, 1.0
    %v186 = vadd.f32 %v184, 1.0
    %v187 = vmul.f32 %v185, 0.5
    %v188 = vmul.f32 %v186, 0.5
    %v189 = vmul.f32 %v167, %v187
    %v190 = vmul.f32 %v170, %v188
    %v191 = vld [vmem:[#allocation2] sm:$0xff]
    %v192 = vld [vmem:[#allocation2 + $0x8] sm:$0xff]
    %v193 = vpack.c.bf16 %v190, %v189
    %v194 = vld [vmem:[#allocation8] sm:$0xf]
    %v195 = vld [vmem:[#allocation8 + $0x4] sm:$0xf]
    %v196 = vld [vmem:[#allocation8 + $0x8] sm:$0xf]
    %v197 = vld [vmem:[#allocation8 + $0xc] sm:$0xf]
    %v198 = vld [vmem:[#allocation8 + $0x10] sm:$0xf]
    %v199 = vld [vmem:[#allocation8 + $0x14] sm:$0xf]
    %v200 = vld [vmem:[#allocation8 + $0x18] sm:$0xf]
    %v201 = vld [vmem:[#allocation8 + $0x1c] sm:$0xf]
    %v202 = vld [vmem:[#allocation8 + $0x20] sm:$0xf]
    %v203 = vld [vmem:[#allocation8 + $0x24] sm:$0xf]
    %v204 = vld [vmem:[#allocation8 + $0x28] sm:$0xf]
    %v205 = vld [vmem:[#allocation8 + $0x2c] sm:$0xf]
    %v206 = vld [vmem:[#allocation8 + $0x30] sm:$0xf]
    %v207 = vld [vmem:[#allocation8 + $0x34] sm:$0xf]
    %v208 = vld [vmem:[#allocation8 + $0x38] sm:$0xf]
    %v209 = vld [vmem:[#allocation8 + $0x3c] sm:$0xf]
    %v226 = vunpack.c.l.b16 %v194
    %v227 = vunpack.c.l.b16 %v195
    %v228 = vunpack.c.l.b16 %v196
    %v229 = vunpack.c.l.b16 %v197
    %v230 = vunpack.c.l.b16 %v198
    %v231 = vunpack.c.l.b16 %v199
    %v232 = vunpack.c.l.b16 %v200
    %v233 = vunpack.c.l.b16 %v201
    %v234 = vunpack.c.l.b16 %v202
    %v235 = vunpack.c.l.b16 %v203
    %v236 = vunpack.c.l.b16 %v204
    %v237 = vunpack.c.l.b16 %v205
    %v238 = vunpack.c.l.b16 %v206
    %v239 = vunpack.c.l.b16 %v207
    %v240 = vunpack.c.l.b16 %v208
    %v241 = vunpack.c.l.b16 %v209
    %v242 = vpack.c.b16 %v227, %v226
    %v243 = vpack.c.b16 %v229, %v228
    %v244 = vpack.c.b16 %v231, %v230
    %v245 = vpack.c.b16 %v233, %v232
    %v246 = vpack.c.b16 %v235, %v234
    %v247 = vpack.c.b16 %v237, %v236
    %v248 = vpack.c.b16 %v239, %v238
    %v249 = vpack.c.b16 %v241, %v240
    %258 = vmatprep.subr.bf16.mxu0 0
    %259 = vmatpush1.bf16.msra.mxu0 %v249
    %260 = vmatprep.subr.bf16.mxu0 0
    %261 = vmatpush1.bf16.msra.mxu0 %v248
    %262 = vmatprep.subr.bf16.mxu0 0
    %263 = vmatpush1.bf16.msra.mxu0 %v247
    %264 = vmatprep.subr.bf16.mxu0 0
    %265 = vmatpush1.bf16.msra.mxu0 %v246
    %266 = vmatprep.subr.bf16.mxu0 0
    %267 = vmatpush1.bf16.msra.mxu0 %v245
    %268 = vmatprep.subr.bf16.mxu0 0
    %269 = vmatpush1.bf16.msra.mxu0 %v244
    %270 = vmatprep.subr.bf16.mxu0 0
    %271 = vmatpush1.bf16.msra.mxu0 %v243
    %272 = vmatprep.subr.bf16.mxu0 0
    %273 = vmatpush1.bf16.msra.mxu0 %v242
    %274 = vmatprep.subr.bf16.mxu0 0
    %275 = vmatpush2.bf16.msra.mxu0 0
    %276 = vmatprep.subr.bf16.mxu0 0
    %277 = vmatpush2.bf16.msra.mxu0 0
    %278 = vmatprep.subr.bf16.mxu0 0
    %279 = vmatpush2.bf16.msra.mxu0 0
    %280 = vmatprep.subr.bf16.mxu0 0
    %281 = vmatpush2.bf16.msra.mxu0 0
    %282 = vmatprep.subr.bf16.mxu0 0
    %283 = vmatpush2.bf16.msra.mxu0 0
    %284 = vmatprep.subr.bf16.mxu0 0
    %285 = vmatpush2.bf16.msra.mxu0 0
    %286 = vmatprep.subr.bf16.mxu0 0
    %287 = vmatpush2.bf16.msra.mxu0 0
    %288 = vmatprep.subr.bf16.mxu0 0
    %289 = vmatpush2.bf16.msra.mxu0 0
    %290 = vmatprep.mubr.bf16.mxu0 0
    %291 = vmatmul.mubr.bf16.gmra.mxu0 %v193
    %v292 = vpop.f32.mrf.mxu0
    %v293 = vadd.f32 0.0, %v292
    %v294 = vpop.f32.mrf.mxu0
    %v295 = vpop.f32.mrf.mxu0
    %v296 = vadd.f32 0.0, %v295
    %v297 = vpop.f32.mrf.mxu0
    %298 = vdwg.mxu0
    %v299 = vadd.f32 %v191, %v293
    %v300 = vadd.f32 %v192, %v296
    %301 = vst [vmem:[#allocation2] sm:$0xff] %v299
    %302 = vst [vmem:[#allocation2 + $0x8] sm:$0xff] %v300
    // Predicated region
    $region30: #{tpu_custom_call.1} parent=1 // pred_check
      %p303 = pneg %p57
    $region31: #{tpu_custom_call.1} parent=1 // pred_check_branch
      %305 = sbr.rel (%p303) target = $region33
    $region32: #{tpu_custom_call.1} parent=1 // pred_region
      %v306 = vld [vmem:[#allocation2] sm:$0xff]
      %v307 = vld [vmem:[#allocation2 + $0x8] sm:$0xff]
      %308 = vst [vmem:[#allocation9] sm:$0xff] %v306
      %309 = vst [vmem:[#allocation9 + $0x8] sm:$0xff] %v307
    $region33: #{tpu_custom_call.1} parent=1 // pred_fallthru
      _
    // Predicated region
    $region34: #{tpu_custom_call.1} parent=1 // pred_check
      _
    $region35: #{tpu_custom_call.1} parent=1 // pred_check_branch
      %311 = sbr.rel (0) target = $region37
    $region36: #{tpu_custom_call.1} parent=1 // pred_region
      %s313 = ssub.s32 256, 256
      %314 = vsyncadd [#allocation5], %s313
      %s315 = sshll.u32 [#allocation9], 4
      %s316 = int_to_ptr.vmem [resolvable:$true] %s315
      %321 = dma.vmem_to_hbm [thread:$0]  %s316, 256, %s3, [#allocation5], 128, 128, 8
    $region37: #{tpu_custom_call.1} parent=1 // pred_fallthru
      _
    // Predicated region
    $region38: #{tpu_custom_call.1} parent=1 // pred_check
      _
    $region39: #{tpu_custom_call.1} parent=1 // pred_check_branch
      %323 = sbr.rel (0) target = $region41
    $region40: #{tpu_custom_call.1} parent=1 // pred_region
      %324 = dma.done [#allocation5], 256
    $region41: #{tpu_custom_call.1} parent=1 // pred_fallthru
      _
    %325 = vsyncpa [#allocation4], 1
    %326 = vsyncpa [#allocation7], 1
    %327 = vsyncpa [#allocation5], 1

</llo_original>
